<compile_context>
chip_gen: v6e
topology: v6e:2x2x1
jax: 0.10.0
libtpu: 0.0.40
codegen_flags: <defaults>
</compile_context>

<pallas_src>
import jax
import jax.numpy as jnp
from jax.experimental import pallas as pl
from jax.experimental.pallas import tpu as pltpu


def _pad_kernel(x_ref, o_ref):
    """Copy input into the top-left corner; zero only the pad strips."""
    tb, h, w = x_ref.shape
    _, ho, wo = o_ref.shape
    # Interior: written exactly once (no full-tile zero pass).
    o_ref[:, :h, :w] = x_ref[...]
    # Bottom strip: rows [h, ho), full lane width.
    o_ref[:, h:, :] = jnp.zeros((tb, ho - h, wo), dtype=o_ref.dtype)
    # Right strip: rows [0, h), cols [w, wo).
    o_ref[:, :h, w:] = jnp.zeros((tb, h, wo - w), dtype=o_ref.dtype)


def dynamic_pad(x, stride_product):
    """Pallas equivalent of DynamicPadLayer.forward.

    Pads the last two dims of an NCHW tensor on the right/bottom by
    p = stride_product - H % stride_product (p derived from H only, applied to
    both H and W, exactly mirroring the PyTorch module — including
    p == stride_product when H is already a multiple).
    """
    N, C, H, W = x.shape
    p = stride_product - (H % stride_product)  # static, trace-time
    Ho, Wo = H + p, W + p

    nplanes = N * C
    x_flat = x.reshape(nplanes, H, W)

    # ---- choose TB: planes per block -------------------------------------
    itemsize = jnp.dtype(x.dtype).itemsize
    target_out_bytes = 2 * 1024 * 1024  # ~2 MiB output tile (mem-bound sweet spot)
    tb_cap = max(1, target_out_bytes // max(1, Ho * Wo * itemsize))
    # Keep the grid >= 2 steps when possible (v7x: 2 TensorCores share HBM).
    if nplanes >= 2:
        tb_cap = min(tb_cap, nplanes // 2)
    tb_cap = max(1, min(tb_cap, nplanes))
    # Largest divisor of nplanes <= tb_cap so every block is full.
    TB = 1
    for d in range(1, int(tb_cap) + 1):
        if nplanes % d == 0:
            TB = d

    grid = (pl.cdiv(nplanes, TB),)

    out_flat = pl.pallas_call(
        _pad_kernel,
        out_shape=jax.ShapeDtypeStruct((nplanes, Ho, Wo), x.dtype),
        grid=grid,
        # Last two block dims equal the full array dims -> (8,128) rule satisfied.
        in_specs=[pl.BlockSpec((TB, H, W), lambda i: (i, 0, 0))],
        out_specs=pl.BlockSpec((TB, Ho, Wo), lambda i: (i, 0, 0)),
        compiler_params=pltpu.CompilerParams(
            dimension_semantics=("parallel",)
        ),
    )(x_flat)

    return out_flat.reshape(N, C, Ho, Wo)


if __name__ == "__main__":
    key = jax.random.PRNGKey(0)
    N, C, H, W = 2, 4, 16, 16
    stride_product = 8  # DynamicPadLayer(stride_product=8)

    x = jax.random.normal(key, (N, C, H, W), dtype=jnp.float32)

    out = dynamic_pad(x, stride_product)
    out = jax.block_until_ready(out)

    # Reference: jnp.pad with right/bottom padding p on last two dims.
    p = stride_product - (H % stride_product)
    ref = jnp.pad(x, ((0, 0), (0, 0), (0, p), (0, p)))

    assert out.shape == (N, C, H + p, W + p), out.shape
    assert out.dtype == x.dtype
    assert jnp.allclose(out, ref), "mismatch vs reference pad"

    print("KERNEL_OK")
</pallas_src>

<mosaic_0001>
module attributes {stable_mosaic.version = 11 : i64} {
  func.func @_pad_kernel(%arg0: i32, %arg1: memref<4x16x16xf32, #tpu.memory_space<vmem>>, %arg2: memref<4x24x24xf32, #tpu.memory_space<vmem>>) attributes {dimension_semantics = [#tpu.dimension_semantics<parallel>], iteration_bounds = array<i64: 2>, scalar_prefetch = 0 : i64, scratch_operands = 0 : i64, tpu.core_type = #tpu.core_type<tc>, window_params = [{transform_indices = @transform_0, window_bounds = array<i64: 4, 16, 16>}, {transform_indices = @transform_1, window_bounds = array<i64: 4, 24, 24>}]} {
    %c0 = arith.constant 0 : index
    %c0_0 = arith.constant 0 : index
    %c0_1 = arith.constant 0 : index
    %0 = vector.load %arg1[%c0, %c0_0, %c0_1] : memref<4x16x16xf32, #tpu.memory_space<vmem>>, vector<4x16x16xf32>
    %c0_2 = arith.constant 0 : index
    %c0_3 = arith.constant 0 : index
    %c0_4 = arith.constant 0 : index
    %1 = vector.load %arg2[%c0_2, %c0_3, %c0_4] : memref<4x24x24xf32, #tpu.memory_space<vmem>>, vector<4x16x16xf32>
    tpu.vector_store %arg2[%c0_2, %c0_3, %c0_4], %0 {strides = array<i32>} : memref<4x24x24xf32, #tpu.memory_space<vmem>>, vector<4x16x16xf32>,
    %cst = arith.constant 0.000000e+00 : f32
    %2 = vector.broadcast %cst : f32 to vector<4x8x24xf32>
    %c0_5 = arith.constant 0 : index
    %c16 = arith.constant 16 : index
    %c0_6 = arith.constant 0 : index
    %3 = vector.load %arg2[%c0_5, %c16, %c0_6] : memref<4x24x24xf32, #tpu.memory_space<vmem>>, vector<4x8x24xf32>
    tpu.vector_store %arg2[%c0_5, %c16, %c0_6], %2 {strides = array<i32>} : memref<4x24x24xf32, #tpu.memory_space<vmem>>, vector<4x8x24xf32>,
    %cst_7 = arith.constant 0.000000e+00 : f32
    %4 = vector.broadcast %cst_7 : f32 to vector<4x16x8xf32>
    %c0_8 = arith.constant 0 : index
    %c0_9 = arith.constant 0 : index
    %c16_10 = arith.constant 16 : index
    %5 = vector.load %arg2[%c0_8, %c0_9, %c16_10] : memref<4x24x24xf32, #tpu.memory_space<vmem>>, vector<4x16x8xf32>
    tpu.vector_store %arg2[%c0_8, %c0_9, %c16_10], %4 {strides = array<i32>} : memref<4x24x24xf32, #tpu.memory_space<vmem>>, vector<4x16x8xf32>,
    return
  }
  func.func @transform_0(%arg0: i32) -> (i32, i32, i32) {
    %c0_i32 = arith.constant 0 : i32
    %c0_i32_0 = arith.constant 0 : i32
    %c0_i32_1 = arith.constant 0 : i32
    return %arg0, %c0_i32, %c0_i32_0 : i32, i32, i32
  }
  func.func @transform_1(%arg0: i32) -> (i32, i32, i32) {
    %c0_i32 = arith.constant 0 : i32
    %c0_i32_0 = arith.constant 0 : i32
    %c0_i32_1 = arith.constant 0 : i32
    return %arg0, %c0_i32, %c0_i32_0 : i32, i32, i32
  }
}

</mosaic_0001>

<llo_original>
// kernel: tpu_custom_call.1
$region0: #{tpu_custom_call.1}
  #allocation0 [shape = 'u32[]', space=smem, size = 0x4, offset = 0x4, fixed_abs, tag = 'smem constant byte address 0x4 - core index']
  #allocation1 [shape = 'u32[144,128]{1,0:T(1,128)}', space=vmem, size = 0x12000, scoped, tag = 'internal scratch']
  %s0 = inlined_call_operand.hbm [shape: f32[8,16,16], index: 0, kind: input, shape index: {}]
  %s1 = inlined_call_operand.hbm [shape: f32[8,24,24], index: 1, kind: output, shape index: {}]
  %s2 = sld [smem:[#allocation0]]
  $region41: #{tpu_custom_call.1} parent=0
    _
  %s4 = ssub.s32 1, %s2
  %s5 = scalar_select 0, %s4, %s2
  $region1: #{tpu_custom_call.1} parent=0
    #allocation2 [shape = 'u8[65536]{0}', space=vmem, size = 0x10000, scoped, tag = 'input window, operand 0']
    #allocation3 [shape = 's32[2]{0}', space=sflag, size = 0x8, scoped, tag = 'scoped memory for tpu_custom_call.1']
    #allocation4 [shape = 's32[2]{0}', space=sflag, size = 0x8, scoped, tag = 'scoped memory for tpu_custom_call.1']
    #allocation5 [shape = 'u8[98304]{0}', space=vmem, size = 0x18000, scoped, tag = 'output window, operand 0']
    %6 = vsyncpa [#allocation3], 0
    %s7 = scalar_lea.sflag [#allocation3], 1
    %8 = vsyncpa %s7, 0
    %9 = vsyncpa [#allocation4], 0
    %s10 = scalar_lea.sflag [#allocation4], 1
    %11 = vsyncpa %s10, 0
    loop: start=0, step=1, limit=4
    $region2: #{tpu_custom_call.1} parent=1 // loop_pre_header
      _
    $region3: #{tpu_custom_call.1} parent=1 // loop_header
      %s13 = sphi 0, %s17
      %p14 = scmp.ge.s32.totalorder %s13, 4
      %s23 = sphi 0, %s25
      %s26 = sphi 0, %s23
      %s27 = sphi 0, %s26
      %s43 = sphi 0, %s27
      %s49 = sphi 0, %s51
      %s52 = sphi 0, %s49
      %s53 = sphi 0, %s52
      %s69 = sphi 0, %s53
    $region4: #{tpu_custom_call.1} parent=1 // loop_header_branch
      %16 = sbr.rel (%p14) target = $region8
    $region5: #{tpu_custom_call.1} parent=1 // loop_body
      %s18 = ssub.s32 %s13, 1
      %s19 = ssub.s32 %s13, 2
      %s20 = sadd.s32 %s13, 1
      %s21 = ssub.s32 %s13, %s20
      %p22 = scmp.eq.s32.totalorder %s21, 0
      %s24 = sadd.s32 %s23, 1
      %s25 = scalar_select %p22, %s23, %s24
      %p28 = pneg %p22
      %p29 = scmp.eq.s32.totalorder %s13, 1
      %p30 = por %p28, %p29
      %p31 = scmp.ne.s32.totalorder %s23, %s26
      %p32 = scmp.eq.s32.totalorder %s13, 0
      %p33 = por %p31, %p32
      %p34 = scmp.ne.s32.totalorder %s23, %s26
      %p35 = scmp.eq.s32.totalorder %s18, 1
      %p36 = por %p34, %p35
      %p37 = scmp.ne.s32.totalorder %s26, %s27
      %p38 = scmp.eq.s32.totalorder %s18, 0
      %p39 = por %p37, %p38
      %p40 = scmp.ne.s32.totalorder %s26, %s27
      %p41 = scmp.eq.s32.totalorder %s19, 1
      %p42 = por %p40, %p41
      %p44 = scmp.ne.s32.totalorder %s27, %s43
      %p45 = scmp.eq.s32.totalorder %s19, 0
      %p46 = por %p44, %p45
      %s47 = ssub.s32 %s13, %s20
      %p48 = scmp.eq.s32.totalorder %s47, 0
      %s50 = sadd.s32 %s49, 1
      %s51 = scalar_select %p48, %s49, %s50
      %p54 = pneg %p48
      %p55 = scmp.eq.s32.totalorder %s13, 1
      %p56 = por %p54, %p55
      %p57 = scmp.ne.s32.totalorder %s49, %s52
      %p58 = scmp.eq.s32.totalorder %s13, 0
      %p59 = por %p57, %p58
      %p60 = scmp.ne.s32.totalorder %s49, %s52
      %p61 = scmp.eq.s32.totalorder %s18, 1
      %p62 = por %p60, %p61
      %p63 = scmp.ne.s32.totalorder %s52, %s53
      %p64 = scmp.eq.s32.totalorder %s18, 0
      %p65 = por %p63, %p64
      %p66 = scmp.ne.s32.totalorder %s52, %s53
      %p67 = scmp.eq.s32.totalorder %s19, 1
      %p68 = por %p66, %p67
      %p70 = scmp.ne.s32.totalorder %s53, %s69
      %p71 = scmp.eq.s32.totalorder %s19, 0
      %p72 = por %p70, %p71
      %p73 = scmp.le.s32.totalorder 1, %s13
      %p74 = scmp.lt.s32.totalorder %s13, 3
      %p75 = pnand %p73, %p74
      %p76 = pneg %p75
      // Predicated region
      $region9: #{tpu_custom_call.1} parent=5 // pred_check
        _
      $region10: #{tpu_custom_call.1} parent=5 // pred_check_branch
        %78 = sbr.rel (%p75) target = $region12
      $region11: #{tpu_custom_call.1} parent=5 // pred_region
        %s79 = ssub.s32 %s13, 1
      $region12: #{tpu_custom_call.1} parent=5 // pred_fallthru
        _
      %p80 = scmp.lt.s32.totalorder %s13, 2
      // Predicated region
      $region13: #{tpu_custom_call.1} parent=5 // pred_check
        %p81 = pneg %p80
      $region14: #{tpu_custom_call.1} parent=5 // pred_check_branch
        %83 = sbr.rel (%p81) target = $region16
      $region15: #{tpu_custom_call.1} parent=5 // pred_region
        // Predicated region
        $region17: #{tpu_custom_call.1} parent=15 // pred_check
          %p84 = pneg %p33
        $region18: #{tpu_custom_call.1} parent=15 // pred_check_branch
          %86 = sbr.rel (%p84) target = $region20
        $region19: #{tpu_custom_call.1} parent=15 // pred_region
          %s87 = sand.u32 %s23, 1
          %s88 = scalar_lea.sflag [#allocation3], %s87
          %s89 = sand.u32 %s23, 1
          %s90 = smul.addr %s89, 64
          %s91 = scalar_lea.vmem [#allocation2], %s90
          %s92 = smul.u32 4, %s13
          %s94 = ssub.s32 1024, 1024
          %95 = vsyncadd %s88, %s94
          %s96 = smul.addr %s92, 2
          %s97 = smul.addr %s96, 128
          %s98 = scalar_lea.hbm %s0, %s97
          %s99 = sshll.u32 %s91, 4
          %s100 = int_to_ptr.vmem [resolvable:$true] %s99
          %105 = dma.hbm_to_vmem [thread:$0]  %s98, 1024, %s100, %s88, 128, 128, 8
        $region20: #{tpu_custom_call.1} parent=15 // pred_fallthru
          _
      $region16: #{tpu_custom_call.1} parent=5 // pred_fallthru
        _
      %p106 = scmp.le.s32.totalorder 1, %s13
      %p107 = scmp.lt.s32.totalorder %s13, 3
      %p108 = pnand %p106, %p107
      %p109 = pneg %p108
      // Predicated region
      $region21: #{tpu_custom_call.1} parent=5 // pred_check
        _
      $region22: #{tpu_custom_call.1} parent=5 // pred_check_branch
        %111 = sbr.rel (%p108) target = $region24
      $region23: #{tpu_custom_call.1} parent=5 // pred_region
        %s112 = ssub.s32 %s13, 1
        %s113 = sand.u32 %s26, 1
        %s114 = scalar_lea.sflag [#allocation3], %s113
        %s115 = sand.u32 %s26, 1
        %s116 = smul.addr %s115, 64
        %s117 = scalar_lea.vmem [#allocation2], %s116
        // Predicated region
        $region25: #{tpu_custom_call.1} parent=23 // pred_check
          %p118 = pneg %p39
        $region26: #{tpu_custom_call.1} parent=23 // pred_check_branch
          %120 = sbr.rel (%p118) target = $region28
        $region27: #{tpu_custom_call.1} parent=23 // pred_region
          %121 = dma.done %s114, 1024
        $region28: #{tpu_custom_call.1} parent=23 // pred_fallthru
          _
        %s122 = sand.u32 %s26, 1
        %s123 = scalar_lea.sflag [#allocation3], %s122
        %s124 = sand.u32 %s26, 1
        %s125 = smul.addr %s124, 64
        %s126 = scalar_lea.vmem [#allocation2], %s125
        %p127 = pneg %p39
        %p128 = pneg %p36
        %p129 = pneg %p65
        %p130 = pneg %p62
        %s131 = sand.u32 %s52, 1
        %s132 = scalar_lea.sflag [#allocation4], %s131
        %s133 = sand.u32 %s52, 1
        %s134 = smul.addr %s133, 96
        %s135 = scalar_lea.vmem [#allocation5], %s134
        %s136 = smul.u32 4, %s18
        %s137 = smul.u32 4, %s18
        %v138 = vld [vmem:[%s117] sm:$0xff]
        %v139 = vld [vmem:[%s117 + $0x8] sm:$0xff]
        %v140 = vld [vmem:[%s117 + $0x10] sm:$0xff]
        %v141 = vld [vmem:[%s117 + $0x18] sm:$0xff]
        %v142 = vld [vmem:[%s117 + $0x20] sm:$0xff]
        %v143 = vld [vmem:[%s117 + $0x28] sm:$0xff]
        %v144 = vld [vmem:[%s117 + $0x30] sm:$0xff]
        %v145 = vld [vmem:[%s117 + $0x38] sm:$0xff]
        %vm146 = vcmask 130048
        %147 = vst.msk [vmem:[%s135] sm:$0xff] %vm146, %v138
        %148 = vst.msk [vmem:[%s135 + $0x8] sm:$0xff] %vm146, %v139
        %149 = vst.msk [vmem:[%s135 + $0x18] sm:$0xff] %vm146, %v140
        %150 = vst.msk [vmem:[%s135 + $0x20] sm:$0xff] %vm146, %v141
        %151 = vst.msk [vmem:[%s135 + $0x30] sm:$0xff] %vm146, %v142
        %152 = vst.msk [vmem:[%s135 + $0x38] sm:$0xff] %vm146, %v143
        %153 = vst.msk [vmem:[%s135 + $0x48] sm:$0xff] %vm146, %v144
        %154 = vst.msk [vmem:[%s135 + $0x50] sm:$0xff] %vm146, %v145
        %vm155 = vcmask 195584
        %156 = vst.msk [vmem:[%s135 + $0x10] sm:$0xff] %vm155, 0.0
        %157 = vst.msk [vmem:[%s135 + $0x28] sm:$0xff] %vm155, 0.0
        %158 = vst.msk [vmem:[%s135 + $0x40] sm:$0xff] %vm155, 0.0
        %159 = vst.msk [vmem:[%s135 + $0x58] sm:$0xff] %vm155, 0.0
        %vm160 = vcmask 195712
        %161 = vst.msk [vmem:[%s135] sm:$0xff] %vm160, 0.0
        %162 = vst.msk [vmem:[%s135 + $0x8] sm:$0xff] %vm160, 0.0
        %163 = vst.msk [vmem:[%s135 + $0x18] sm:$0xff] %vm160, 0.0
        %164 = vst.msk [vmem:[%s135 + $0x20] sm:$0xff] %vm160, 0.0
        %165 = vst.msk [vmem:[%s135 + $0x30] sm:$0xff] %vm160, 0.0
        %166 = vst.msk [vmem:[%s135 + $0x38] sm:$0xff] %vm160, 0.0
        %167 = vst.msk [vmem:[%s135 + $0x48] sm:$0xff] %vm160, 0.0
        %168 = vst.msk [vmem:[%s135 + $0x50] sm:$0xff] %vm160, 0.0
        %s169 = sand.u32 %s52, 1
        %s170 = scalar_lea.sflag [#allocation4], %s169
        %s171 = sand.u32 %s52, 1
        %s172 = smul.addr %s171, 96
        %s173 = scalar_lea.vmem [#allocation5], %s172
        // Predicated region
        $region29: #{tpu_custom_call.1} parent=23 // pred_check
          %p174 = pneg %p62
        $region30: #{tpu_custom_call.1} parent=23 // pred_check_branch
          %176 = sbr.rel (%p174) target = $region32
        $region31: #{tpu_custom_call.1} parent=23 // pred_region
          %s177 = smul.u32 4, %s18
          %s179 = ssub.s32 1536, 1536
          %180 = vsyncadd %s170, %s179
          %s181 = smul.addr %s177, 3
          %s182 = smul.addr %s181, 128
          %s183 = scalar_lea.hbm %s1, %s182
          %s184 = sshll.u32 %s173, 4
          %s185 = int_to_ptr.vmem [resolvable:$true] %s184
          %190 = dma.vmem_to_hbm [thread:$0]  %s185, 1536, %s183, %s170, 128, 128, 8
        $region32: #{tpu_custom_call.1} parent=23 // pred_fallthru
          _
      $region24: #{tpu_custom_call.1} parent=5 // pred_fallthru
        _
      %p191 = scmp.le.s32.totalorder 2, %s13
      // Predicated region
      $region33: #{tpu_custom_call.1} parent=5 // pred_check
        %p192 = pneg %p191
      $region34: #{tpu_custom_call.1} parent=5 // pred_check_branch
        %194 = sbr.rel (%p192) target = $region36
      $region35: #{tpu_custom_call.1} parent=5 // pred_region
        %s195 = ssub.s32 %s13, 2
        // Predicated region
        $region37: #{tpu_custom_call.1} parent=35 // pred_check
          %p196 = pneg %p68
        $region38: #{tpu_custom_call.1} parent=35 // pred_check_branch
          %198 = sbr.rel (%p196) target = $region40
        $region39: #{tpu_custom_call.1} parent=35 // pred_region
          %s199 = sand.u32 %s53, 1
          %s200 = scalar_lea.sflag [#allocation4], %s199
          %s201 = sand.u32 %s53, 1
          %s202 = smul.addr %s201, 96
          %s203 = scalar_lea.vmem [#allocation5], %s202
          %204 = dma.done %s200, 1536
        $region40: #{tpu_custom_call.1} parent=35 // pred_fallthru
          _
      $region36: #{tpu_custom_call.1} parent=5 // pred_fallthru
        _
    $region6: #{tpu_custom_call.1} parent=1 // loop_footer
      %s17 = sadd.s32 1, %s13
    $region7: #{tpu_custom_call.1} parent=1 // loop_footer_branch
      %12 = sbr.rel target = $region3
    $region8: #{tpu_custom_call.1} parent=1 // loop_exit
      _
    %205 = vsyncpa [#allocation3], 1
    %s206 = scalar_lea.sflag [#allocation3], 1
    %207 = vsyncpa %s206, 1
    %208 = vsyncpa [#allocation4], 1
    %s209 = scalar_lea.sflag [#allocation4], 1
    %210 = vsyncpa %s209, 1

</llo_original>
